<compile_context>
chip_gen: v6e
topology: v6e:2x2x1
jax: 0.10.0
libtpu: 0.0.40
codegen_flags: <defaults>
</compile_context>

<pallas_src>
import functools

import jax
import jax.numpy as jnp
from jax.experimental import pallas as pl
from jax.experimental.pallas import tpu as pltpu


# ---------------------------------------------------------------------------
# Kernels
# ---------------------------------------------------------------------------

def _ce_kernel(logits_ref, targets_ref, out_ref):
    """Per-sample cross entropy, reduction='none'."""
    logits = logits_ref[...].astype(jnp.float32)              # (TN, C)
    tn, c = logits.shape
    m = jnp.max(logits, axis=-1, keepdims=True)
    z = logits - m
    lse = jnp.log(jnp.sum(jnp.exp(z), axis=-1, keepdims=True))
    class_idx = jax.lax.broadcasted_iota(jnp.int32, (tn, c), 1)
    one_hot = class_idx == targets_ref[...]                    # (TN, C)
    z_at_tgt = jnp.sum(jnp.where(one_hot, z, 0.0), axis=-1, keepdims=True)
    # -log_softmax(x)[t] = lse - z[t]
    out_ref[...] = (lse - z_at_tgt).astype(out_ref.dtype)


def _kd_kernel(logits_ref, targets_ref, teacher_ref, out_ref, *, kd_term, temp):
    """kd_term * T^2 * sum_c KL(softmax(teacher/T) || softmax(student/T))
       + (1 - kd_term) * CE(student, targets),  per sample."""
    logits = logits_ref[...].astype(jnp.float32)               # (TN, C)
    tn, c = logits.shape

    # Single student row max, shared by both softmaxes (max(x/T) == max(x)/T).
    m = jnp.max(logits, axis=-1, keepdims=True)
    z = logits - m

    need_ce = kd_term < 1.0
    lse = None
    if need_ce or temp == 1.0:
        lse = jnp.log(jnp.sum(jnp.exp(z), axis=-1, keepdims=True))

    ce = None
    if need_ce:
        class_idx = jax.lax.broadcasted_iota(jnp.int32, (tn, c), 1)
        one_hot = class_idx == targets_ref[...]
        z_at_tgt = jnp.sum(jnp.where(one_hot, z, 0.0), axis=-1, keepdims=True)
        ce = lse - z_at_tgt                                     # (TN, 1)

    # Student log-softmax at temperature T (reuse z / lse when T == 1).
    if temp == 1.0:
        log_s = z - lse
    else:
        zs = z * (1.0 / temp)
        lse_s = jnp.log(jnp.sum(jnp.exp(zs), axis=-1, keepdims=True))
        log_s = zs - lse_s

    # Teacher distribution: single full-width exp, reused for both log_p_t
    # and p_t.  Normalization is a per-row reciprocal (TN elems) + broadcast
    # multiply on the VPU -- no second (TN, C) exp, no full-width divide.
    teacher = teacher_ref[...].astype(jnp.float32)
    t_scaled = teacher if temp == 1.0 else teacher * (1.0 / temp)
    m_t = jnp.max(t_scaled, axis=-1, keepdims=True)
    zt = t_scaled - m_t
    e_zt = jnp.exp(zt)                                          # (TN, C)
    s_t = jnp.sum(e_zt, axis=-1, keepdims=True)                 # (TN, 1)
    log_p_t = zt - jnp.log(s_t)
    p_t = e_zt * (1.0 / s_t)
    kd = jnp.sum(p_t * (log_p_t - log_s), axis=-1, keepdims=True)  # (TN, 1)

    out = kd * (kd_term * temp * temp)
    if need_ce:
        out = out + ce * (1.0 - kd_term)
    out_ref[...] = out.astype(out_ref.dtype)


# ---------------------------------------------------------------------------
# Wrapper
# ---------------------------------------------------------------------------

def _round_up(x, m):
    return (x + m - 1) // m * m


def _vmem_capacity_bytes():
    """Per-generation VMEM capacity; conservative (v7x) fallback."""
    try:
        cap = getattr(pltpu.get_tpu_info(), "vmem_capacity_bytes", None)
        if cap:
            return int(cap)
    except Exception:
        pass
    return 64 * 1024 * 1024


def _pick_row_tile(n, c, n_wide_inputs, itemsize, vmem_budget, kd_path):
    """Largest multiple-of-8 row tile fitting the VMEM budget.

    Double-buffered DMA buffers are charged at the NATIVE dtype itemsize
    (bf16 == 2B); the f32 in-kernel temporaries (upcasts, z, exp, p_t, ...)
    are charged separately so v7x's 64 MiB isn't blown by unbudgeted scratch.
    """
    dma_per_row = n_wide_inputs * 2 * c * itemsize          # 2x: double buffer
    n_interm = 6 if kd_path else 3                           # (TN, C) f32 temps
    per_row = dma_per_row + n_interm * c * 4
    tn = (vmem_budget // per_row) // 8 * 8
    tn = max(8, min(tn, 1024))
    # Never collapse the grid to a single step when N permits: keeps the
    # DMA/compute pipeline primed and both v7x TensorCores busy.
    tn = min(tn, max(8, _round_up(pl.cdiv(n, 8), 8)))
    return tn


def kd_loss(output_logits, targets, teacher_logits=None, *, KD_term=0.0, T=1.0):
    """Pallas implementation of KDLoss.forward (per-sample loss, shape (N,))."""
    assert 0 <= KD_term <= 1
    assert 0 < T
    n, c = output_logits.shape
    itemsize = jnp.dtype(output_logits.dtype).itemsize

    # KD_term == 0 -> the KD term contributes nothing; skip the teacher DMA.
    use_kd = (teacher_logits is not None) and (KD_term > 0.0)
    n_wide = 2 if use_kd else 1

    vmem_cap = _vmem_capacity_bytes()
    vmem_limit = (vmem_cap * 3) // 4          # 96 MiB on v5e/v6e, 48 MiB on v7x
    vmem_budget = (vmem_limit * 3) // 4       # headroom for output/targets/regalloc

    tn = _pick_row_tile(n, c, n_wide, itemsize, vmem_budget, use_kd)
    # Ragged last block: Pallas masks OOB writes; all math is row-local so the
    # unspecified rows in the final tile never reach the (N,) result.
    grid = (pl.cdiv(n, tn),)

    tgt = targets.astype(jnp.int32).reshape(n, 1)

    wide_spec = pl.BlockSpec((tn, c), lambda i: (i, 0))
    narrow_spec = pl.BlockSpec((tn, 1), lambda i: (i, 0))
    compiler_params = pltpu.CompilerParams(
        dimension_semantics=("parallel",),     # rows independent -> v7x 2-TC
        vmem_limit_bytes=vmem_limit,
    )
    out_shape = jax.ShapeDtypeStruct((n, 1), jnp.float32)

    if use_kd:
        kernel = functools.partial(_kd_kernel,
                                   kd_term=float(KD_term), temp=float(T))
        cost = pl.CostEstimate(
            flops=12 * n * c,
            transcendentals=4 * n * c,
            bytes_accessed=2 * n * c * itemsize + n * 8,
        )
        out = pl.pallas_call(
            kernel,
            out_shape=out_shape,
            grid=grid,
            in_specs=[wide_spec, narrow_spec, wide_spec],
            out_specs=narrow_spec,
            compiler_params=compiler_params,
            cost_estimate=cost,
        )(output_logits, tgt, teacher_logits)
    else:
        cost = pl.CostEstimate(
            flops=5 * n * c,
            transcendentals=2 * n * c,
            bytes_accessed=n * c * itemsize + n * 8,
        )
        out = pl.pallas_call(
            _ce_kernel,
            out_shape=out_shape,
            grid=grid,
            in_specs=[wide_spec, narrow_spec],
            out_specs=narrow_spec,
            compiler_params=compiler_params,
            cost_estimate=cost,
        )(output_logits, tgt)
    return out[:, 0]


# ---------------------------------------------------------------------------
# Reference & test
# ---------------------------------------------------------------------------

def _reference(output_logits, targets, teacher_logits, KD_term, T):
    log_p = jax.nn.log_softmax(output_logits, axis=1)
    ce = -jnp.take_along_axis(log_p, targets[:, None], axis=1)[:, 0]
    if teacher_logits is None:
        return ce
    log_s = jax.nn.log_softmax(output_logits / T, axis=1)
    p_t = jax.nn.softmax(teacher_logits / T, axis=1)
    kd = jnp.sum(p_t * (jnp.log(p_t) - log_s), axis=1)
    return kd * KD_term * T * T + ce * (1 - KD_term)


if __name__ == "__main__":
    key = jax.random.PRNGKey(0)
    k1, k2, k3 = jax.random.split(key, 3)

    N, C = 10, 32          # batch of 10 samples (exercises the ragged last tile), 32 classes

    student = jax.random.normal(k1, (N, C), dtype=jnp.float32)
    teacher = jax.random.normal(k2, (N, C), dtype=jnp.float32)
    targets = jax.random.randint(k3, (N,), 0, C, dtype=jnp.int32)

    # Path 1: CE only (teacher_logits=None)
    ce_only = jax.block_until_ready(kd_loss(student, targets, None,
                                            KD_term=0.5, T=2.0))
    # Path 2: KD + CE (general)
    kd_out = jax.block_until_ready(kd_loss(student, targets, teacher,
                                           KD_term=0.5, T=2.0))
    # Path 3: KD only, T == 1 (specialized branches)
    kd_only = jax.block_until_ready(kd_loss(student, targets, teacher,
                                            KD_term=1.0, T=1.0))
    # Path 4: KD_term == 0 with a teacher -> routed to CE kernel
    kd_zero = jax.block_until_ready(kd_loss(student, targets, teacher,
                                            KD_term=0.0, T=2.0))

    ref_ce = _reference(student, targets, None, 0.5, 2.0)
    ref_kd = _reference(student, targets, teacher, 0.5, 2.0)
    ref_kd1 = _reference(student, targets, teacher, 1.0, 1.0)
    ref_kd0 = _reference(student, targets, teacher, 0.0, 2.0)

    assert ce_only.shape == (N,) and kd_out.shape == (N,)
    assert jnp.allclose(ce_only, ref_ce, atol=1e-5, rtol=1e-5)
    assert jnp.allclose(kd_out, ref_kd, atol=1e-5, rtol=1e-5)
    assert jnp.allclose(kd_only, ref_kd1, atol=1e-5, rtol=1e-5)
    assert jnp.allclose(kd_zero, ref_kd0, atol=1e-5, rtol=1e-5)

    print("KERNEL_OK")
</pallas_src>

<mosaic_0001>
module attributes {stable_mosaic.version = 11 : i64} {
  func.func @_ce_kernel(%arg0: i32, %arg1: memref<8x32xf32, #tpu.memory_space<vmem>>, %arg2: memref<8x1xi32, #tpu.memory_space<vmem>>, %arg3: memref<8x1xf32, #tpu.memory_space<vmem>>) attributes {dimension_semantics = [#tpu.dimension_semantics<parallel>], iteration_bounds = array<i64: 2>, scalar_prefetch = 0 : i64, scratch_operands = 0 : i64, tpu.core_type = #tpu.core_type<tc>, window_params = [{transform_indices = @transform_0, window_bounds = array<i64: 8, 32>}, {transform_indices = @transform_1, window_bounds = array<i64: 8, 1>}, {transform_indices = @transform_2, window_bounds = array<i64: 8, 1>}]} {
    %c0 = arith.constant 0 : index
    %c0_0 = arith.constant 0 : index
    %0 = vector.load %arg1[%c0, %c0_0] : memref<8x32xf32, #tpu.memory_space<vmem>>, vector<8x32xf32>
    %cst = arith.constant dense<0xFF800000> : vector<8xf32>
    %1 = vector.multi_reduction <maximumf>, %0, %cst [1] : vector<8x32xf32> to vector<8xf32>
    %2 = vector.shape_cast %1 : vector<8xf32> to vector<8x1xf32>
    %3 = vector.broadcast %2 : vector<8x1xf32> to vector<8x32xf32>
    %4 = arith.subf %0, %3 : vector<8x32xf32>
    %5 = math.exp %4 : vector<8x32xf32>
    %cst_1 = arith.constant dense<0.000000e+00> : vector<8xf32>
    %6 = vector.multi_reduction <add>, %5, %cst_1 [1] : vector<8x32xf32> to vector<8xf32>
    %7 = vector.shape_cast %6 : vector<8xf32> to vector<8x1xf32>
    %8 = math.log %7 : vector<8x1xf32>
    %9 = tpu.iota {dimensions = array<i32: 1>} : vector<8x32xi32>
    %c0_2 = arith.constant 0 : index
    %c0_3 = arith.constant 0 : index
    %10 = vector.load %arg2[%c0_2, %c0_3] : memref<8x1xi32, #tpu.memory_space<vmem>>, vector<8x1xi32>
    %11 = vector.broadcast %10 : vector<8x1xi32> to vector<8x32xi32>
    %12 = arith.cmpi eq, %9, %11 : vector<8x32xi32>
    %cst_4 = arith.constant 0.000000e+00 : f32
    %13 = vector.broadcast %cst_4 : f32 to vector<8x32xf32>
    %14 = arith.select %12, %4, %13 : vector<8x32xi1>, vector<8x32xf32>
    %cst_5 = arith.constant dense<0.000000e+00> : vector<8xf32>
    %15 = vector.multi_reduction <add>, %14, %cst_5 [1] : vector<8x32xf32> to vector<8xf32>
    %16 = vector.shape_cast %15 : vector<8xf32> to vector<8x1xf32>
    %17 = arith.subf %8, %16 : vector<8x1xf32>
    %c0_6 = arith.constant 0 : index
    %c0_7 = arith.constant 0 : index
    %18 = vector.load %arg3[%c0_6, %c0_7] : memref<8x1xf32, #tpu.memory_space<vmem>>, vector<8x1xf32>
    tpu.vector_store %arg3[%c0_6, %c0_7], %17 {strides = array<i32>} : memref<8x1xf32, #tpu.memory_space<vmem>>, vector<8x1xf32>,
    return
  }
  func.func @transform_0(%arg0: i32) -> (i32, i32) {
    %c0_i32 = arith.constant 0 : i32
    %c0_i32_0 = arith.constant 0 : i32
    return %arg0, %c0_i32 : i32, i32
  }
  func.func @transform_1(%arg0: i32) -> (i32, i32) {
    %c0_i32 = arith.constant 0 : i32
    %c0_i32_0 = arith.constant 0 : i32
    return %arg0, %c0_i32 : i32, i32
  }
  func.func @transform_2(%arg0: i32) -> (i32, i32) {
    %c0_i32 = arith.constant 0 : i32
    %c0_i32_0 = arith.constant 0 : i32
    return %arg0, %c0_i32 : i32, i32
  }
}

</mosaic_0001>

<llo_original>
// kernel: tpu_custom_call.1
$region0: #{tpu_custom_call.1}
  #allocation0 [shape = 'u32[]', space=smem, size = 0x4, offset = 0x4, fixed_abs, tag = 'smem constant byte address 0x4 - core index']
  #allocation1 [shape = 'u32[144,128]{1,0:T(1,128)}', space=vmem, size = 0x12000, scoped, tag = 'internal scratch']
  %s0 = inlined_call_operand.vmem [shape: f32[10,32], index: 0, kind: input, shape index: {}]
  %s1 = inlined_call_operand.vmem [shape: s32[10,1], index: 1, kind: input, shape index: {}]
  %s2 = inlined_call_operand.vmem [shape: f32[10,1], index: 2, kind: output, shape index: {}]
  %s3 = sld [smem:[#allocation0]]
  $region41: #{tpu_custom_call.1} parent=0
    _
  %s5 = ssub.s32 1, %s3
  %s6 = scalar_select 0, %s5, %s3
  loop: start=0, step=1, limit=4
  $region2: #{tpu_custom_call.1} parent=0 // loop_pre_header
    _
  $region3: #{tpu_custom_call.1} parent=0 // loop_header
    %s8 = sphi 0, %s12
    %p9 = scmp.ge.s32.totalorder %s8, 4
    %s18 = sphi 0, %s20
    %s21 = sphi 0, %s18
    %s22 = sphi 0, %s21
    %s38 = sphi 0, %s22
    %s44 = sphi 0, %s46
    %s47 = sphi 0, %s44
    %s48 = sphi 0, %s47
    %s64 = sphi 0, %s48
    %s70 = sphi 0, %s72
    %s73 = sphi 0, %s70
    %s74 = sphi 0, %s73
    %s90 = sphi 0, %s74
  $region4: #{tpu_custom_call.1} parent=0 // loop_header_branch
    %11 = sbr.rel (%p9) target = $region8
  $region5: #{tpu_custom_call.1} parent=0 // loop_body
    %s13 = ssub.s32 %s8, 1
    %s14 = ssub.s32 %s8, 2
    %s15 = sadd.s32 %s8, 1
    %s16 = ssub.s32 %s8, %s15
    %p17 = scmp.eq.s32.totalorder %s16, 0
    %s19 = sadd.s32 %s18, 1
    %s20 = scalar_select %p17, %s18, %s19
    %p23 = pneg %p17
    %p24 = scmp.eq.s32.totalorder %s8, 1
    %p25 = por %p23, %p24
    %p26 = scmp.ne.s32.totalorder %s18, %s21
    %p27 = scmp.eq.s32.totalorder %s8, 0
    %p28 = por %p26, %p27
    %p29 = scmp.ne.s32.totalorder %s18, %s21
    %p30 = scmp.eq.s32.totalorder %s13, 1
    %p31 = por %p29, %p30
    %p32 = scmp.ne.s32.totalorder %s21, %s22
    %p33 = scmp.eq.s32.totalorder %s13, 0
    %p34 = por %p32, %p33
    %p35 = scmp.ne.s32.totalorder %s21, %s22
    %p36 = scmp.eq.s32.totalorder %s14, 1
    %p37 = por %p35, %p36
    %p39 = scmp.ne.s32.totalorder %s22, %s38
    %p40 = scmp.eq.s32.totalorder %s14, 0
    %p41 = por %p39, %p40
    %s42 = ssub.s32 %s8, %s15
    %p43 = scmp.eq.s32.totalorder %s42, 0
    %s45 = sadd.s32 %s44, 1
    %s46 = scalar_select %p43, %s44, %s45
    %p49 = pneg %p43
    %p50 = scmp.eq.s32.totalorder %s8, 1
    %p51 = por %p49, %p50
    %p52 = scmp.ne.s32.totalorder %s44, %s47
    %p53 = scmp.eq.s32.totalorder %s8, 0
    %p54 = por %p52, %p53
    %p55 = scmp.ne.s32.totalorder %s44, %s47
    %p56 = scmp.eq.s32.totalorder %s13, 1
    %p57 = por %p55, %p56
    %p58 = scmp.ne.s32.totalorder %s47, %s48
    %p59 = scmp.eq.s32.totalorder %s13, 0
    %p60 = por %p58, %p59
    %p61 = scmp.ne.s32.totalorder %s47, %s48
    %p62 = scmp.eq.s32.totalorder %s14, 1
    %p63 = por %p61, %p62
    %p65 = scmp.ne.s32.totalorder %s48, %s64
    %p66 = scmp.eq.s32.totalorder %s14, 0
    %p67 = por %p65, %p66
    %s68 = ssub.s32 %s8, %s15
    %p69 = scmp.eq.s32.totalorder %s68, 0
    %s71 = sadd.s32 %s70, 1
    %s72 = scalar_select %p69, %s70, %s71
    %p75 = pneg %p69
    %p76 = scmp.eq.s32.totalorder %s8, 1
    %p77 = por %p75, %p76
    %p78 = scmp.ne.s32.totalorder %s70, %s73
    %p79 = scmp.eq.s32.totalorder %s8, 0
    %p80 = por %p78, %p79
    %p81 = scmp.ne.s32.totalorder %s70, %s73
    %p82 = scmp.eq.s32.totalorder %s13, 1
    %p83 = por %p81, %p82
    %p84 = scmp.ne.s32.totalorder %s73, %s74
    %p85 = scmp.eq.s32.totalorder %s13, 0
    %p86 = por %p84, %p85
    %p87 = scmp.ne.s32.totalorder %s73, %s74
    %p88 = scmp.eq.s32.totalorder %s14, 1
    %p89 = por %p87, %p88
    %p91 = scmp.ne.s32.totalorder %s74, %s90
    %p92 = scmp.eq.s32.totalorder %s14, 0
    %p93 = por %p91, %p92
    %p94 = scmp.le.s32.totalorder 1, %s8
    %p95 = scmp.lt.s32.totalorder %s8, 3
    %p96 = pnand %p94, %p95
    %p97 = pneg %p96
    // Predicated region
    $region9: #{tpu_custom_call.1} parent=5 // pred_check
      _
    $region10: #{tpu_custom_call.1} parent=5 // pred_check_branch
      %99 = sbr.rel (%p96) target = $region12
    $region11: #{tpu_custom_call.1} parent=5 // pred_region
      %s100 = ssub.s32 %s8, 1
    $region12: #{tpu_custom_call.1} parent=5 // pred_fallthru
      _
    %p101 = scmp.lt.s32.totalorder %s8, 2
    // Predicated region
    $region13: #{tpu_custom_call.1} parent=5 // pred_check
      %p102 = pneg %p101
    $region14: #{tpu_custom_call.1} parent=5 // pred_check_branch
      %104 = sbr.rel (%p102) target = $region16
    $region15: #{tpu_custom_call.1} parent=5 // pred_region
      // Predicated region
      $region17: #{tpu_custom_call.1} parent=15 // pred_check
        %p105 = pneg %p28
      $region18: #{tpu_custom_call.1} parent=15 // pred_check_branch
        %107 = sbr.rel (%p105) target = $region20
      $region19: #{tpu_custom_call.1} parent=15 // pred_region
        %p108 = scmp.lt.s32.totalorder %s8, 1
        %s109 = scalar_select %p108, %s8, 1
        %s110 = smul.addr %s109, 8
        %s111 = scalar_lea.vmem %s0, %s110
      $region20: #{tpu_custom_call.1} parent=15 // pred_fallthru
        _
      // Predicated region
      $region21: #{tpu_custom_call.1} parent=15 // pred_check
        %p112 = pneg %p54
      $region22: #{tpu_custom_call.1} parent=15 // pred_check_branch
        %114 = sbr.rel (%p112) target = $region24
      $region23: #{tpu_custom_call.1} parent=15 // pred_region
        %p115 = scmp.lt.s32.totalorder %s8, 1
        %s116 = scalar_select %p115, %s8, 1
        %s117 = smul.addr %s116, 8
        %s118 = scalar_lea.vmem %s1, %s117
      $region24: #{tpu_custom_call.1} parent=15 // pred_fallthru
        _
    $region16: #{tpu_custom_call.1} parent=5 // pred_fallthru
      _
    %p119 = scmp.le.s32.totalorder 1, %s8
    %p120 = scmp.lt.s32.totalorder %s8, 3
    %p121 = pnand %p119, %p120
    %p122 = pneg %p121
    // Predicated region
    $region25: #{tpu_custom_call.1} parent=5 // pred_check
      _
    $region26: #{tpu_custom_call.1} parent=5 // pred_check_branch
      %124 = sbr.rel (%p121) target = $region28
    $region27: #{tpu_custom_call.1} parent=5 // pred_region
      %s125 = ssub.s32 %s8, 1
      %p126 = scmp.lt.s32.totalorder %s13, 1
      %s127 = scalar_select %p126, %s13, 1
      %s128 = smul.addr %s127, 8
      %s129 = scalar_lea.vmem %s0, %s128
      %p130 = pneg %p34
      %p131 = pneg %p31
      %p132 = scmp.lt.s32.totalorder %s13, 1
      %s133 = scalar_select %p132, %s13, 1
      %s134 = smul.addr %s133, 8
      %s135 = scalar_lea.vmem %s1, %s134
      %p136 = pneg %p60
      %p137 = pneg %p57
      %p138 = pneg %p86
      %p139 = pneg %p83
      %p140 = scmp.lt.s32.totalorder %s13, 1
      %s141 = scalar_select %p140, %s13, 1
      %s142 = smul.addr %s141, 8
      %s143 = scalar_lea.vmem %s2, %s142
      %p144 = scmp.lt.s32.totalorder %s13, 1
      %s145 = scalar_select %p144, %s13, 1
      %s146 = smul.addr %s145, 8
      %s147 = scalar_lea.vmem %s0, %s146
      %p148 = scmp.lt.s32.totalorder %s13, 1
      %s149 = scalar_select %p148, %s13, 1
      %s150 = smul.addr %s149, 8
      %s151 = scalar_lea.vmem %s1, %s150
      %p152 = scmp.lt.s32.totalorder %s13, 1
      %s153 = scalar_select %p152, %s13, 1
      %s154 = smul.addr %s153, 8
      %s155 = scalar_lea.vmem %s2, %s154
      %v156 = vld [vmem:[%s147] sm:$0xff]
      %vm157 = vcmask 261120
      %v158 = vsel %vm157, %v156, -inf
      %159 = vmax.xlane.f32.xlu0 %v158
      %v160 = vpop.xlane.xlu0 %159
      %v161 = vsub.f32 %v156, %v160
      %v162 = vmul.f32 %v161, 1.442695
      %v163 = vpow.pop %v162
      %v164 = vsel %vm157, %v163, 0.0
      %165 = vadd.xlane.f32.xlu0 %v164
      %v166 = vpop.xlane.xlu0 %165
      %v167 = vlog2.pop %v166
      %v168 = vmul.f32 %v167, 0.6931472
      %v169 = vlaneseq
      %v170 = vand.u32 %v169, 127
      %v171 = vld [vmem:[%s151] sm:$0xff]
      %172 = vset.pattern.permute.xlu0 0
      %173 = vperm.xlu0 %172, %v171
      %v174 = vpop.permute.xlu0 %173
      %vm175 = vcmp.eq.s32.totalorder %v170, %v174
      %v176 = vsel %vm175, %v161, 0.0
      %v177 = vsel %vm157, %v176, 0.0
      %178 = vadd.xlane.f32.xlu0 %v177
      %v179 = vpop.xlane.xlu0 %178
      %v180 = vsub.f32 %v168, %v179
      %vm181 = vcmask 7168
      %182 = vst.msk [vmem:[%s155] sm:$0xff] %vm181, %v180
      %p183 = scmp.lt.s32.totalorder %s13, 1
      %s184 = scalar_select %p183, %s13, 1
      %s185 = smul.addr %s184, 8
      %s186 = scalar_lea.vmem %s2, %s185
      // Predicated region
      $region29: #{tpu_custom_call.1} parent=27 // pred_check
        %p187 = pneg %p83
      $region30: #{tpu_custom_call.1} parent=27 // pred_check_branch
        %189 = sbr.rel (%p187) target = $region32
      $region31: #{tpu_custom_call.1} parent=27 // pred_region
        _
      $region32: #{tpu_custom_call.1} parent=27 // pred_fallthru
        _
    $region28: #{tpu_custom_call.1} parent=5 // pred_fallthru
      _
    %p190 = scmp.le.s32.totalorder 2, %s8
    // Predicated region
    $region33: #{tpu_custom_call.1} parent=5 // pred_check
      %p191 = pneg %p190
    $region34: #{tpu_custom_call.1} parent=5 // pred_check_branch
      %193 = sbr.rel (%p191) target = $region36
    $region35: #{tpu_custom_call.1} parent=5 // pred_region
      %s194 = ssub.s32 %s8, 2
      // Predicated region
      $region37: #{tpu_custom_call.1} parent=35 // pred_check
        %p195 = pneg %p89
      $region38: #{tpu_custom_call.1} parent=35 // pred_check_branch
        %197 = sbr.rel (%p195) target = $region40
      $region39: #{tpu_custom_call.1} parent=35 // pred_region
        %p198 = scmp.lt.s32.totalorder %s14, 1
        %s199 = scalar_select %p198, %s14, 1
        %s200 = smul.addr %s199, 8
        %s201 = scalar_lea.vmem %s2, %s200
      $region40: #{tpu_custom_call.1} parent=35 // pred_fallthru
        _
    $region36: #{tpu_custom_call.1} parent=5 // pred_fallthru
      _
  $region6: #{tpu_custom_call.1} parent=0 // loop_footer
    %s12 = sadd.s32 1, %s8
  $region7: #{tpu_custom_call.1} parent=0 // loop_footer_branch
    %7 = sbr.rel target = $region3
  $region8: #{tpu_custom_call.1} parent=0 // loop_exit
    _

</llo_original>
